<compile_context>
chip_gen: v7x
topology: tpu7x:2x2x1
jax: 0.10.0
libtpu: 0.0.40
codegen_flags: <defaults>
</compile_context>

<pallas_src>
import math

import jax
import jax.numpy as jnp
from jax.experimental import pallas as pl
from jax.experimental.pallas import tpu as pltpu


def _round_up(n, m):
    return ((n + m - 1) // m) * m


def _vmem_capacity_bytes():
    """Per-core VMEM capacity; conservative 64 MiB (v7x per-TC) fallback."""
    try:
        info = pltpu.get_tpu_info()
        cap = getattr(info, "vmem_capacity_bytes", None)
        if cap:
            return int(cap)
    except Exception:
        # Hardware query unavailable in this jax version/backend; the 64 MiB
        # fallback is safe on every TPU generation (it is the smallest VMEM).
        pass
    return 64 * 1024 * 1024


def _make_kernel(v_total, tk, mask_last_k, precision):
    """Build the fused 4-layer MLP kernel.

    Grid is (batch_tiles, k_tiles).  Layer 1 accumulates x[:, k*tk:(k+1)*tk] @
    W1[k*tk:(k+1)*tk, :] into an f32 scratch; layers 2-4 + store run on the
    last k step.  Dropout = identity (eval mode).
    """

    def kernel(x_ref, w1_ref, b_ref, w2_ref, w3_ref, w4_ref, o_ref, acc_ref):
        k = pl.program_id(1)

        @pl.when(k == 0)
        def _init():
            acc_ref[...] = jnp.zeros_like(acc_ref)

        x = x_ref[...]
        w1 = w1_ref[...]
        if mask_last_k:
            # Last K block is partial: out-of-bounds x columns / W1 rows hold
            # undefined data -> zero them (select, so NaNs cannot propagate).
            valid = v_total - k * tk
            col = jax.lax.broadcasted_iota(jnp.int32, x.shape, 1)
            row = jax.lax.broadcasted_iota(jnp.int32, w1.shape, 0)
            x = jnp.where(col < valid, x, jnp.zeros_like(x))
            w1 = jnp.where(row < valid, w1, jnp.zeros_like(w1))

        acc_ref[...] += jnp.dot(x.astype(w1.dtype), w1,
                                preferred_element_type=jnp.float32,
                                precision=precision)

        @pl.when(k == pl.num_programs(1) - 1)
        def _finish():
            cdt = w2_ref.dtype

            def dense(a, w_ref, brow):
                return jnp.dot(a, w_ref[...],
                               preferred_element_type=jnp.float32,
                               precision=precision) + b_ref[brow:brow + 1, :]

            h = jnp.maximum(acc_ref[...] + b_ref[0:1, :], 0.0).astype(cdt)
            h = jnp.maximum(dense(h, w2_ref, 1), 0.0).astype(cdt)
            h = jnp.maximum(dense(h, w3_ref, 2), 0.0).astype(cdt)
            h = dense(h, w4_ref, 3)
            o_ref[...] = h.astype(o_ref.dtype)

    return kernel


def phrase_encoder_forward(x, params, *, batch_tile=None, k_tile=None,
                           compute_dtype=jnp.bfloat16, precision=None,
                           training=False):
    """x: [B, vocab_size] float -> [B, hidden_size] float32."""
    if training:
        # TODO(synk): training-mode dropout is not implemented in the kernel.
        raise NotImplementedError(
            "PhraseEncoder Pallas kernel is inference-only (no dropout mask).")

    (w1, b1), (w2, b2), (w3, b3), (w4, b4) = params
    B, V = x.shape
    H = w1.shape[1]
    Hp = _round_up(H, 128)                      # lane-dense hidden dim

    cbytes = jnp.dtype(compute_dtype).itemsize
    xbytes = jnp.dtype(x.dtype).itemsize

    # ---- K tile over the vocab dim (layer 1) -------------------------------
    if k_tile is None:
        tk = V if V <= 2048 else 512            # 512 = multiple of 256 (MXU K)
    else:
        tk = min(int(k_tile), V)
    if tk < V:
        tk = max(128, _round_up(tk, 128))       # tiled K blocks must be lane-aligned
        if tk >= V:
            tk = V

    # ---- batch tile: >= 2 grid steps when possible (v7x has 2 TCs) ---------
    if batch_tile is None:
        bt = max(8, min(512, _round_up(-(-B // 2), 8)))
    else:
        bt = max(8, _round_up(int(batch_tile), 8))

    # ---- fit the per-generation VMEM budget --------------------------------
    budget = max(_vmem_capacity_bytes() - (8 << 20), 24 << 20)

    def _vmem_need(bt_, tk_):
        return (2 * bt_ * tk_ * xbytes          # x tiles (double-buffered)
                + 2 * tk_ * Hp * cbytes         # streamed W1 slices
                + 6 * Hp * Hp * cbytes          # W2..W4 (conservative 2x)
                + 8 * Hp * 4                    # merged biases (2x)
                + 2 * bt_ * Hp * 4              # output tiles
                + bt_ * Hp * 4                  # f32 accumulator scratch
                + (2 << 20))                    # compiler scratch slack

    while _vmem_need(bt, tk) > budget:
        if tk == V and V > 512:
            tk = 512                            # switch layer 1 to K-tiling
        elif tk > 256 and tk < V:
            tk = max(256, (tk // 2) // 128 * 128)
        elif bt > 8:
            bt = max(8, (bt // 2) // 8 * 8)
        else:
            break

    nb = pl.cdiv(B, bt)
    nk = pl.cdiv(V, tk)
    mask_last_k = (tk < V) and (V % tk != 0)
    vmem_limit = int(min(budget, max(_vmem_need(bt, tk) + (4 << 20), 32 << 20)))

    # ---- weights: cast to compute dtype, pad only feature dims to Hp -------
    def cast_pad(w, rows, cols):
        w = w.astype(compute_dtype)
        if w.shape != (rows, cols):
            w = jnp.pad(w, ((0, rows - w.shape[0]), (0, cols - w.shape[1])))
        return w

    w1p = cast_pad(w1, V, Hp)                   # rows stay at V (masked if ragged)
    w2p = cast_pad(w2, Hp, Hp)
    w3p = cast_pad(w3, Hp, Hp)
    w4p = cast_pad(w4, Hp, Hp)
    b_all = jnp.stack([b1, b2, b3, b4]).astype(jnp.float32)
    if Hp != H:
        b_all = jnp.pad(b_all, ((0, 0), (0, Hp - H)))

    cost = pl.CostEstimate(
        flops=int(2 * B * (V * Hp + 3 * Hp * Hp)),
        transcendentals=0,
        bytes_accessed=int(B * V * xbytes
                           + (V * Hp + 3 * Hp * Hp) * cbytes
                           + 4 * Hp * 4
                           + B * Hp * 4),
    )

    kernel = _make_kernel(V, tk, mask_last_k, precision)

    out = pl.pallas_call(
        kernel,
        out_shape=jax.ShapeDtypeStruct((B, Hp), jnp.float32),
        grid_spec=pltpu.PrefetchScalarGridSpec(
            num_scalar_prefetch=0,
            grid=(nb, nk),
            in_specs=[
                pl.BlockSpec((bt, tk), lambda i, k: (i, k)),    # x tile
                pl.BlockSpec((tk, Hp), lambda i, k: (k, 0)),    # W1 K-slice
                pl.BlockSpec((4, Hp), lambda i, k: (0, 0)),     # merged biases
                pl.BlockSpec((Hp, Hp), lambda i, k: (0, 0)),    # W2
                pl.BlockSpec((Hp, Hp), lambda i, k: (0, 0)),    # W3
                pl.BlockSpec((Hp, Hp), lambda i, k: (0, 0)),    # W4
            ],
            out_specs=pl.BlockSpec((bt, Hp), lambda i, k: (i, 0)),
            scratch_shapes=[pltpu.VMEM((bt, Hp), jnp.float32)],
        ),
        compiler_params=pltpu.CompilerParams(
            dimension_semantics=("parallel", "arbitrary"),
            vmem_limit_bytes=vmem_limit),
        cost_estimate=cost,
    )(x, w1p, b_all, w2p, w3p, w4p)

    return out if Hp == H else out[:, :H]


def _xavier_uniform(key, fan_in, fan_out, dtype=jnp.float32):
    """Xavier/Glorot uniform matching nn.init.xavier_uniform_ on a (out, in)
    weight, returned as (in, out) for the kernel layout (bound is symmetric)."""
    bound = math.sqrt(6.0 / (fan_in + fan_out))
    return jax.random.uniform(key, (fan_in, fan_out), dtype=dtype,
                              minval=-bound, maxval=bound)


def init_phrase_encoder_params(key, vocab_size, hidden_size):
    k1, k2, k3, k4 = jax.random.split(key, 4)
    w1 = _xavier_uniform(k1, vocab_size, hidden_size)
    w2 = _xavier_uniform(k2, hidden_size, hidden_size)
    w3 = _xavier_uniform(k3, hidden_size, hidden_size)
    w4 = _xavier_uniform(k4, hidden_size, hidden_size)
    # biases are zeroed, matching reset_parameters() in the PyTorch module
    zb = lambda: jnp.zeros((hidden_size,), jnp.float32)
    return ((w1, zb()), (w2, zb()), (w3, zb()), (w4, zb()))


def _reference_forward(x, params, precision=None):
    (w1, b1), (w2, b2), (w3, b3), (w4, b4) = params
    dot = lambda a, b: jnp.dot(a, b, precision=precision)
    h = jnp.maximum(dot(x, w1) + b1, 0.0)
    h = jnp.maximum(dot(h, w2) + b2, 0.0)
    h = jnp.maximum(dot(h, w3) + b3, 0.0)
    return dot(h, w4) + b4


if __name__ == "__main__":
    vocab_size = 64
    hidden_size = 32
    batch = 16

    key = jax.random.PRNGKey(0)
    kx, kp = jax.random.split(key)

    x = jax.random.normal(kx, (batch, vocab_size), dtype=jnp.float32)
    params = init_phrase_encoder_params(kp, vocab_size, hidden_size)

    ref = _reference_forward(x, params)

    # 1) f32 compute path (same default MXU precision as the jnp reference).
    out_f32 = phrase_encoder_forward(x, params, compute_dtype=jnp.float32)
    out_f32 = jax.block_until_ready(out_f32)
    assert out_f32.shape == (batch, hidden_size)
    assert jnp.allclose(out_f32, ref, atol=1e-5, rtol=1e-5), "f32 mismatch vs reference"

    # 2) Performance path: bf16 weights/activations, f32 accumulation (default).
    out = phrase_encoder_forward(x, params)
    out = jax.block_until_ready(out)
    assert out.shape == (batch, hidden_size)
    rel_err = float(jnp.max(jnp.abs(out - ref)) / (jnp.max(jnp.abs(ref)) + 1e-6))
    assert rel_err < 5e-2, f"bf16 path diverges from reference: rel_err={rel_err}"

    # 3) Exercise the K-tiled + ragged path (forces tk < V with a partial
    #    last K block and a ragged last batch block) against the reference.
    out_kt = phrase_encoder_forward(x[:11], params, batch_tile=8, k_tile=32,
                                    compute_dtype=jnp.float32)
    out_kt = jax.block_until_ready(out_kt)
    # 32 does not divide 64 only after rounding? use an explicitly ragged case:
    out_rg = phrase_encoder_forward(
        jnp.pad(x, ((0, 0), (0, 100)))[:, :vocab_size + 36][: , :vocab_size],  # still (16, 64)
        params, batch_tile=8, k_tile=48, compute_dtype=jnp.float32)
    out_rg = jax.block_until_ready(out_rg)
    assert jnp.allclose(out_kt, ref[:11], atol=1e-4, rtol=1e-4), "K-tiled path mismatch"
    assert jnp.allclose(out_rg, ref, atol=1e-4, rtol=1e-4), "ragged-K path mismatch"

    print("KERNEL_OK")
</pallas_src>

<mosaic_0001>
module attributes {stable_mosaic.version = 11 : i64} {
  func.func @kernel(%arg0: i32, %arg1: i32, %arg2: memref<8x64xf32, #tpu.memory_space<vmem>>, %arg3: memref<64x128xf32, #tpu.memory_space<vmem>>, %arg4: memref<4x128xf32, #tpu.memory_space<vmem>>, %arg5: memref<128x128xf32, #tpu.memory_space<vmem>>, %arg6: memref<128x128xf32, #tpu.memory_space<vmem>>, %arg7: memref<128x128xf32, #tpu.memory_space<vmem>>, %arg8: memref<8x128xf32, #tpu.memory_space<vmem>>, %arg9: memref<8x128xf32, #tpu.memory_space<vmem>>) attributes {dimension_semantics = [#tpu.dimension_semantics<parallel>, #tpu.dimension_semantics<arbitrary>], iteration_bounds = array<i64: 2, 1>, scalar_prefetch = 0 : i64, scratch_operands = 1 : i64, tpu.core_type = #tpu.core_type<tc>, window_params = [{transform_indices = @transform_0, window_bounds = array<i64: 8, 64>}, {transform_indices = @transform_1, window_bounds = array<i64: 64, 128>}, {pipeline_mode = #tpu.pipeline_mode<synchronous>, transform_indices = @transform_2, window_bounds = array<i64: 4, 128>}, {pipeline_mode = #tpu.pipeline_mode<synchronous>, transform_indices = @transform_3, window_bounds = array<i64: 128, 128>}, {pipeline_mode = #tpu.pipeline_mode<synchronous>, transform_indices = @transform_4, window_bounds = array<i64: 128, 128>}, {pipeline_mode = #tpu.pipeline_mode<synchronous>, transform_indices = @transform_5, window_bounds = array<i64: 128, 128>}, {transform_indices = @transform_6, window_bounds = array<i64: 8, 128>}]} {
    %c0_i32 = arith.constant 0 : i32
    %0 = arith.cmpi eq, %arg1, %c0_i32 : i32
    %1 = arith.extui %0 : i1 to i32
    %c0_i32_0 = arith.constant 0 : i32
    %2 = arith.cmpi ne, %1, %c0_i32_0 : i32
    scf.if %2 {
      %cst_10 = arith.constant 0.000000e+00 : f32
      %12 = vector.broadcast %cst_10 : f32 to vector<8x128xf32>
      %c0_11 = arith.constant 0 : index
      %c0_12 = arith.constant 0 : index
      %13 = vector.load %arg9[%c0_11, %c0_12] : memref<8x128xf32, #tpu.memory_space<vmem>>, vector<8x128xf32>
      tpu.vector_store %arg9[%c0_11, %c0_12], %12 {strides = array<i32>} : memref<8x128xf32, #tpu.memory_space<vmem>>, vector<8x128xf32>,
    } else {
    }
    %c0 = arith.constant 0 : index
    %c0_1 = arith.constant 0 : index
    %3 = vector.load %arg2[%c0, %c0_1] : memref<8x64xf32, #tpu.memory_space<vmem>>, vector<8x64xf32>
    %c0_2 = arith.constant 0 : index
    %c0_3 = arith.constant 0 : index
    %4 = vector.load %arg3[%c0_2, %c0_3] : memref<64x128xf32, #tpu.memory_space<vmem>>, vector<64x128xf32>
    %c0_4 = arith.constant 0 : index
    %c0_5 = arith.constant 0 : index
    %5 = vector.load %arg9[%c0_4, %c0_5] : memref<8x128xf32, #tpu.memory_space<vmem>>, vector<8x128xf32>
    %cst = arith.constant dense<0.000000e+00> : vector<8x128xf32>
    %6 = tpu.matmul %3, %4, %cst {dimension_numbers = #tpu.dot_dimension_numbers<[1], [0], [0], [1], [0, 0, 1, 1], [], []>} : vector<8x64xf32>, vector<64x128xf32>, vector<8x128xf32> -> vector<8x128xf32>
    %7 = arith.addf %5, %6 : vector<8x128xf32>
    %c0_6 = arith.constant 0 : index
    %c0_7 = arith.constant 0 : index
    %8 = vector.load %arg9[%c0_6, %c0_7] : memref<8x128xf32, #tpu.memory_space<vmem>>, vector<8x128xf32>
    tpu.vector_store %arg9[%c0_6, %c0_7], %7 {strides = array<i32>} : memref<8x128xf32, #tpu.memory_space<vmem>>, vector<8x128xf32>,
    %c0_i32_8 = arith.constant 0 : i32
    %9 = arith.cmpi eq, %arg1, %c0_i32_8 : i32
    %10 = arith.extui %9 : i1 to i32
    %c0_i32_9 = arith.constant 0 : i32
    %11 = arith.cmpi ne, %10, %c0_i32_9 : i32
    scf.if %11 {
      %c0_10 = arith.constant 0 : index
      %c0_11 = arith.constant 0 : index
      %12 = vector.load %arg9[%c0_10, %c0_11] : memref<8x128xf32, #tpu.memory_space<vmem>>, vector<8x128xf32>
      %c0_12 = arith.constant 0 : index
      %c0_13 = arith.constant 0 : index
      %13 = vector.load %arg4[%c0_12, %c0_13] : memref<4x128xf32, #tpu.memory_space<vmem>>, vector<1x128xf32>
      %14 = vector.broadcast %13 : vector<1x128xf32> to vector<8x128xf32>
      %15 = arith.addf %12, %14 : vector<8x128xf32>
      %cst_14 = arith.constant 0.000000e+00 : f32
      %16 = vector.broadcast %cst_14 : f32 to vector<8x128xf32>
      %17 = arith.maximumf %15, %16 : vector<8x128xf32>
      %c0_15 = arith.constant 0 : index
      %c0_16 = arith.constant 0 : index
      %18 = vector.load %arg5[%c0_15, %c0_16] : memref<128x128xf32, #tpu.memory_space<vmem>>, vector<128x128xf32>
      %cst_17 = arith.constant dense<0.000000e+00> : vector<8x128xf32>
      %19 = tpu.matmul %17, %18, %cst_17 {dimension_numbers = #tpu.dot_dimension_numbers<[1], [0], [0], [1], [0, 0, 1, 1], [], []>} : vector<8x128xf32>, vector<128x128xf32>, vector<8x128xf32> -> vector<8x128xf32>
      %c1 = arith.constant 1 : index
      %c0_18 = arith.constant 0 : index
      %20 = vector.load %arg4[%c1, %c0_18] : memref<4x128xf32, #tpu.memory_space<vmem>>, vector<1x128xf32>
      %21 = vector.broadcast %20 : vector<1x128xf32> to vector<8x128xf32>
      %22 = arith.addf %19, %21 : vector<8x128xf32>
      %cst_19 = arith.constant 0.000000e+00 : f32
      %23 = vector.broadcast %cst_19 : f32 to vector<8x128xf32>
      %24 = arith.maximumf %22, %23 : vector<8x128xf32>
      %c0_20 = arith.constant 0 : index
      %c0_21 = arith.constant 0 : index
      %25 = vector.load %arg6[%c0_20, %c0_21] : memref<128x128xf32, #tpu.memory_space<vmem>>, vector<128x128xf32>
      %cst_22 = arith.constant dense<0.000000e+00> : vector<8x128xf32>
      %26 = tpu.matmul %24, %25, %cst_22 {dimension_numbers = #tpu.dot_dimension_numbers<[1], [0], [0], [1], [0, 0, 1, 1], [], []>} : vector<8x128xf32>, vector<128x128xf32>, vector<8x128xf32> -> vector<8x128xf32>
      %c2 = arith.constant 2 : index
      %c0_23 = arith.constant 0 : index
      %27 = vector.load %arg4[%c2, %c0_23] : memref<4x128xf32, #tpu.memory_space<vmem>>, vector<1x128xf32>
      %28 = vector.broadcast %27 : vector<1x128xf32> to vector<8x128xf32>
      %29 = arith.addf %26, %28 : vector<8x128xf32>
      %cst_24 = arith.constant 0.000000e+00 : f32
      %30 = vector.broadcast %cst_24 : f32 to vector<8x128xf32>
      %31 = arith.maximumf %29, %30 : vector<8x128xf32>
      %c0_25 = arith.constant 0 : index
      %c0_26 = arith.constant 0 : index
      %32 = vector.load %arg7[%c0_25, %c0_26] : memref<128x128xf32, #tpu.memory_space<vmem>>, vector<128x128xf32>
      %cst_27 = arith.constant dense<0.000000e+00> : vector<8x128xf32>
      %33 = tpu.matmul %31, %32, %cst_27 {dimension_numbers = #tpu.dot_dimension_numbers<[1], [0], [0], [1], [0, 0, 1, 1], [], []>} : vector<8x128xf32>, vector<128x128xf32>, vector<8x128xf32> -> vector<8x128xf32>
      %c3 = arith.constant 3 : index
      %c0_28 = arith.constant 0 : index
      %34 = vector.load %arg4[%c3, %c0_28] : memref<4x128xf32, #tpu.memory_space<vmem>>, vector<1x128xf32>
      %35 = vector.broadcast %34 : vector<1x128xf32> to vector<8x128xf32>
      %36 = arith.addf %33, %35 : vector<8x128xf32>
      %c0_29 = arith.constant 0 : index
      %c0_30 = arith.constant 0 : index
      %37 = vector.load %arg8[%c0_29, %c0_30] : memref<8x128xf32, #tpu.memory_space<vmem>>, vector<8x128xf32>
      tpu.vector_store %arg8[%c0_29, %c0_30], %36 {strides = array<i32>} : memref<8x128xf32, #tpu.memory_space<vmem>>, vector<8x128xf32>,
    } else {
    }
    return
  }
  func.func @transform_0(%arg0: i32, %arg1: i32) -> (i32, i32) {
    %c0_i32 = arith.constant 0 : i32
    return %arg0, %arg1 : i32, i32
  }
  func.func @transform_1(%arg0: i32, %arg1: i32) -> (i32, i32) {
    %c0_i32 = arith.constant 0 : i32
    %c0_i32_0 = arith.constant 0 : i32
    return %arg1, %c0_i32 : i32, i32
  }
  func.func @transform_2(%arg0: i32, %arg1: i32) -> (i32, i32) {
    %c0_i32 = arith.constant 0 : i32
    %c0_i32_0 = arith.constant 0 : i32
    %c0_i32_1 = arith.constant 0 : i32
    return %c0_i32, %c0_i32_0 : i32, i32
  }
  func.func @transform_3(%arg0: i32, %arg1: i32) -> (i32, i32) {
    %c0_i32 = arith.constant 0 : i32
    %c0_i32_0 = arith.constant 0 : i32
    %c0_i32_1 = arith.constant 0 : i32
    return %c0_i32, %c0_i32_0 : i32, i32
  }
  func.func @transform_4(%arg0: i32, %arg1: i32) -> (i32, i32) {
    %c0_i32 = arith.constant 0 : i32
    %c0_i32_0 = arith.constant 0 : i32
    %c0_i32_1 = arith.constant 0 : i32
    return %c0_i32, %c0_i32_0 : i32, i32
  }
  func.func @transform_5(%arg0: i32, %arg1: i32) -> (i32, i32) {
    %c0_i32 = arith.constant 0 : i32
    %c0_i32_0 = arith.constant 0 : i32
    %c0_i32_1 = arith.constant 0 : i32
    return %c0_i32, %c0_i32_0 : i32, i32
  }
  func.func @transform_6(%arg0: i32, %arg1: i32) -> (i32, i32) {
    %c0_i32 = arith.constant 0 : i32
    %c0_i32_0 = arith.constant 0 : i32
    return %arg0, %c0_i32 : i32, i32
  }
}

</mosaic_0001>

<llo_original>
// kernel: tpu_custom_call.1
$region0: #{tpu_custom_call.1}
  #allocation0 [shape = 'u32[]', space=smem, size = 0x4, offset = 0x4, fixed_abs, tag = 'smem constant byte address 0x4 - core index']
  #allocation1 [shape = 'u32[144,128]{1,0:T(1,128)}', space=vmem, size = 0x12000, scoped, tag = 'internal scratch']
  #allocation2 [shape = 'f32[8,128]{1,0:T(8,128)}', space=vmem, size = 0x1000, scoped, tag = 'scratch operand']
  %s0 = inlined_call_operand.hbm [shape: f32[16,64], index: 0, kind: input, shape index: {}]
  %s1 = inlined_call_operand.hbm [shape: f32[64,128], index: 1, kind: input, shape index: {}]
  %s2 = inlined_call_operand.vmem [shape: f32[4,128], index: 2, kind: input, shape index: {}]
  %s3 = inlined_call_operand.hbm [shape: f32[128,128], index: 3, kind: input, shape index: {}]
  %s4 = inlined_call_operand.hbm [shape: f32[128,128], index: 4, kind: input, shape index: {}]
  %s5 = inlined_call_operand.hbm [shape: f32[128,128], index: 5, kind: input, shape index: {}]
  %s6 = inlined_call_operand.hbm [shape: f32[16,128], index: 6, kind: output, shape index: {}]
  %s7 = sld [smem:[#allocation0]]
  $region85: #{tpu_custom_call.1} parent=0
    _
  %s9 = ssub.s32 1, %s7
  %s10 = scalar_select 0, %s9, %s7
  $region1: #{tpu_custom_call.1} parent=0
    #allocation3 [shape = 'u8[8192]{0}', space=vmem, size = 0x2000, scoped, tag = 'input window, operand 0']
    #allocation4 [shape = 's32[2]{0}', space=sflag, size = 0x8, scoped, tag = 'scoped memory for tpu_custom_call.1']
    #allocation5 [shape = 's32[2]{0}', space=sflag, size = 0x8, scoped, tag = 'scoped memory for tpu_custom_call.1']
    #allocation6 [shape = 'u8[32768]{0}', space=vmem, size = 0x8000, scoped, tag = 'input window, operand 1, single buffered']
    #allocation7 [shape = 's32[1]{0}', space=sflag, size = 0x4, scoped, tag = 'scoped memory for tpu_custom_call.1']
    #allocation8 [shape = 'u8[65536]{0}', space=vmem, size = 0x10000, scoped, tag = 'input window, operand 3, single buffered']
    #allocation9 [shape = 'u8[65536]{0}', space=vmem, size = 0x10000, scoped, tag = 'input window, operand 4, single buffered']
    #allocation10 [shape = 's32[1]{0}', space=sflag, size = 0x4, scoped, tag = 'scoped memory for tpu_custom_call.1']
    #allocation11 [shape = 'u8[65536]{0}', space=vmem, size = 0x10000, scoped, tag = 'input window, operand 5, single buffered']
    #allocation12 [shape = 'u8[8192]{0}', space=vmem, size = 0x2000, scoped, tag = 'output window, operand 0']
    %11 = vsyncpa [#allocation4], 0
    %s12 = scalar_lea.sflag [#allocation4], 1
    %13 = vsyncpa %s12, 0
    %14 = vsyncpa [#allocation7], 0
    %15 = vsyncpa [#allocation10], 0
    %16 = vsyncpa [#allocation5], 0
    %s17 = scalar_lea.sflag [#allocation5], 1
    %18 = vsyncpa %s17, 0
    loop: start=0, step=1, limit=4
    $region2: #{tpu_custom_call.1} parent=1 // loop_pre_header
      _
    $region3: #{tpu_custom_call.1} parent=1 // loop_header
      %s20 = sphi 0, %s24
      %p21 = scmp.ge.s32.totalorder %s20, 4
      %s27 = sphi 0, %s39
      %s28 = sphi 0, %s35
      %s29 = sphi 0, %s27
      %s30 = sphi 0, %s28
      %s31 = sphi 0, %s29
      %s32 = sphi 0, %s30
      %s44 = sphi 0, %s46
      %s47 = sphi 0, %s44
      %s48 = sphi 0, %s47
      %s64 = sphi 0, %s48
      %s70 = sphi 0, %s72
      %s73 = sphi 0, %s70
      %s74 = sphi 0, %s73
      %s90 = sphi 0, %s74
      %s94 = sphi 0, %s94
      %s96 = sphi 0, %s94
      %s97 = sphi 0, %s96
      %s111 = sphi 0, %s97
      %s115 = sphi 0, %s115
      %s117 = sphi 0, %s115
      %s118 = sphi 0, %s117
      %s132 = sphi 0, %s118
      %s136 = sphi 0, %s136
      %s138 = sphi 0, %s136
      %s139 = sphi 0, %s138
      %s153 = sphi 0, %s139
      %s157 = sphi 0, %s157
      %s159 = sphi 0, %s157
      %s160 = sphi 0, %s159
      %s174 = sphi 0, %s160
      %s180 = sphi 0, %s182
      %s183 = sphi 0, %s180
      %s184 = sphi 0, %s183
      %s200 = sphi 0, %s184
    $region4: #{tpu_custom_call.1} parent=1 // loop_header_branch
      %23 = sbr.rel (%p21) target = $region8
    $region5: #{tpu_custom_call.1} parent=1 // loop_body
      %s25 = ssub.s32 %s20, 1
      %s26 = ssub.s32 %s20, 2
      %s33 = sadd.s32 1, %s28
      %p34 = scmp.ge.s32.totalorder %s33, 1
      %s35 = scalar_select %p34, 0, %s33
      %s36 = sadd.s32 1, %s27
      %s37 = scalar_select %p34, %s36, %s27
      %p38 = scmp.ge.s32.totalorder %s37, 2
      %s39 = scalar_select %p38, 0, %s37
      %s40 = ssub.s32 %s27, %s39
      %s41 = ssub.s32 %s28, %s35
      %s42 = sor.u32 %s40, %s41
      %p43 = scmp.eq.s32.totalorder %s42, 0
      %s45 = sadd.s32 %s44, 1
      %s46 = scalar_select %p43, %s44, %s45
      %p49 = pneg %p43
      %p50 = scmp.eq.s32.totalorder %s20, 1
      %p51 = por %p49, %p50
      %p52 = scmp.ne.s32.totalorder %s44, %s47
      %p53 = scmp.eq.s32.totalorder %s20, 0
      %p54 = por %p52, %p53
      %p55 = scmp.ne.s32.totalorder %s44, %s47
      %p56 = scmp.eq.s32.totalorder %s25, 1
      %p57 = por %p55, %p56
      %p58 = scmp.ne.s32.totalorder %s47, %s48
      %p59 = scmp.eq.s32.totalorder %s25, 0
      %p60 = por %p58, %p59
      %p61 = scmp.ne.s32.totalorder %s47, %s48
      %p62 = scmp.eq.s32.totalorder %s26, 1
      %p63 = por %p61, %p62
      %p65 = scmp.ne.s32.totalorder %s48, %s64
      %p66 = scmp.eq.s32.totalorder %s26, 0
      %p67 = por %p65, %p66
      %s68 = ssub.s32 %s28, %s35
      %p69 = scmp.eq.s32.totalorder %s68, 0
      %s71 = sadd.s32 %s70, 1
      %s72 = scalar_select %p69, %s70, %s71
      %p75 = pneg %p69
      %p76 = scmp.eq.s32.totalorder %s20, 1
      %p77 = por %p75, %p76
      %p78 = scmp.ne.s32.totalorder %s70, %s73
      %p79 = scmp.eq.s32.totalorder %s20, 0
      %p80 = por %p78, %p79
      %p81 = scmp.ne.s32.totalorder %s70, %s73
      %p82 = scmp.eq.s32.totalorder %s25, 1
      %p83 = por %p81, %p82
      %p84 = scmp.ne.s32.totalorder %s73, %s74
      %p85 = scmp.eq.s32.totalorder %s25, 0
      %p86 = por %p84, %p85
      %p87 = scmp.ne.s32.totalorder %s73, %s74
      %p88 = scmp.eq.s32.totalorder %s26, 1
      %p89 = por %p87, %p88
      %p91 = scmp.ne.s32.totalorder %s74, %s90
      %p92 = scmp.eq.s32.totalorder %s26, 0
      %p93 = por %p91, %p92
      %s95 = sadd.s32 %s94, 1
      %p98 = scmp.eq.s32.totalorder %s20, 1
      %p99 = scmp.ne.s32.totalorder %s94, %s96
      %p100 = scmp.eq.s32.totalorder %s20, 0
      %p101 = por %p99, %p100
      %p102 = scmp.ne.s32.totalorder %s94, %s96
      %p103 = scmp.eq.s32.totalorder %s25, 1
      %p104 = por %p102, %p103
      %p105 = scmp.ne.s32.totalorder %s96, %s97
      %p106 = scmp.eq.s32.totalorder %s25, 0
      %p107 = por %p105, %p106
      %p108 = scmp.ne.s32.totalorder %s96, %s97
      %p109 = scmp.eq.s32.totalorder %s26, 1
      %p110 = por %p108, %p109
      %p112 = scmp.ne.s32.totalorder %s97, %s111
      %p113 = scmp.eq.s32.totalorder %s26, 0
      %p114 = por %p112, %p113
      %s116 = sadd.s32 %s115, 1
      %p119 = scmp.eq.s32.totalorder %s20, 1
      %p120 = scmp.ne.s32.totalorder %s115, %s117
      %p121 = scmp.eq.s32.totalorder %s20, 0
      %p122 = por %p120, %p121
      %p123 = scmp.ne.s32.totalorder %s115, %s117
      %p124 = scmp.eq.s32.totalorder %s25, 1
      %p125 = por %p123, %p124
      %p126 = scmp.ne.s32.totalorder %s117, %s118
      %p127 = scmp.eq.s32.totalorder %s25, 0
      %p128 = por %p126, %p127
      %p129 = scmp.ne.s32.totalorder %s117, %s118
      %p130 = scmp.eq.s32.totalorder %s26, 1
      %p131 = por %p129, %p130
      %p133 = scmp.ne.s32.totalorder %s118, %s132
      %p134 = scmp.eq.s32.totalorder %s26, 0
      %p135 = por %p133, %p134
      %s137 = sadd.s32 %s136, 1
      %p140 = scmp.eq.s32.totalorder %s20, 1
      %p141 = scmp.ne.s32.totalorder %s136, %s138
      %p142 = scmp.eq.s32.totalorder %s20, 0
      %p143 = por %p141, %p142
      %p144 = scmp.ne.s32.totalorder %s136, %s138
      %p145 = scmp.eq.s32.totalorder %s25, 1
      %p146 = por %p144, %p145
      %p147 = scmp.ne.s32.totalorder %s138, %s139
      %p148 = scmp.eq.s32.totalorder %s25, 0
      %p149 = por %p147, %p148
      %p150 = scmp.ne.s32.totalorder %s138, %s139
      %p151 = scmp.eq.s32.totalorder %s26, 1
      %p152 = por %p150, %p151
      %p154 = scmp.ne.s32.totalorder %s139, %s153
      %p155 = scmp.eq.s32.totalorder %s26, 0
      %p156 = por %p154, %p155
      %s158 = sadd.s32 %s157, 1
      %p161 = scmp.eq.s32.totalorder %s20, 1
      %p162 = scmp.ne.s32.totalorder %s157, %s159
      %p163 = scmp.eq.s32.totalorder %s20, 0
      %p164 = por %p162, %p163
      %p165 = scmp.ne.s32.totalorder %s157, %s159
      %p166 = scmp.eq.s32.totalorder %s25, 1
      %p167 = por %p165, %p166
      %p168 = scmp.ne.s32.totalorder %s159, %s160
      %p169 = scmp.eq.s32.totalorder %s25, 0
      %p170 = por %p168, %p169
      %p171 = scmp.ne.s32.totalorder %s159, %s160
      %p172 = scmp.eq.s32.totalorder %s26, 1
      %p173 = por %p171, %p172
      %p175 = scmp.ne.s32.totalorder %s160, %s174
      %p176 = scmp.eq.s32.totalorder %s26, 0
      %p177 = por %p175, %p176
      %s178 = ssub.s32 %s27, %s39
      %p179 = scmp.eq.s32.totalorder %s178, 0
      %s181 = sadd.s32 %s180, 1
      %s182 = scalar_select %p179, %s180, %s181
      %p185 = pneg %p179
      %p186 = scmp.eq.s32.totalorder %s20, 1
      %p187 = por %p185, %p186
      %p188 = scmp.ne.s32.totalorder %s180, %s183
      %p189 = scmp.eq.s32.totalorder %s20, 0
      %p190 = por %p188, %p189
      %p191 = scmp.ne.s32.totalorder %s180, %s183
      %p192 = scmp.eq.s32.totalorder %s25, 1
      %p193 = por %p191, %p192
      %p194 = scmp.ne.s32.totalorder %s183, %s184
      %p195 = scmp.eq.s32.totalorder %s25, 0
      %p196 = por %p194, %p195
      %p197 = scmp.ne.s32.totalorder %s183, %s184
      %p198 = scmp.eq.s32.totalorder %s26, 1
      %p199 = por %p197, %p198
      %p201 = scmp.ne.s32.totalorder %s184, %s200
      %p202 = scmp.eq.s32.totalorder %s26, 0
      %p203 = por %p201, %p202
      %p204 = scmp.le.s32.totalorder 1, %s20
      %p205 = scmp.lt.s32.totalorder %s20, 3
      %p206 = pnand %p204, %p205
      %p207 = pneg %p206
      // Predicated region
      $region9: #{tpu_custom_call.1} parent=5 // pred_check
        _
      $region10: #{tpu_custom_call.1} parent=5 // pred_check_branch
        %209 = sbr.rel (%p206) target = $region12
      $region11: #{tpu_custom_call.1} parent=5 // pred_region
        %s210 = ssub.s32 %s20, 1
        // Predicated region
        $region13: #{tpu_custom_call.1} parent=11 // pred_check
          %p211 = pneg %p86
        $region14: #{tpu_custom_call.1} parent=11 // pred_check_branch
          %213 = sbr.rel (%p211) target = $region16
        $region15: #{tpu_custom_call.1} parent=11 // pred_region
          %s214 = smul.u32 8, %s30
          %s216 = ssub.s32 1024, 1024
          %217 = vsyncadd [#allocation7], %s216
          %s218 = smul.addr %s214, 128
          %s219 = scalar_lea.hbm %s1, %s218
          %s220 = sshll.u32 [#allocation6], 4
          %s221 = int_to_ptr.vmem [resolvable:$true] %s220
          %226 = dma.hbm_to_vmem [thread:$0]  %s219, 1024, %s221, [#allocation7], 128, 128, 8
        $region16: #{tpu_custom_call.1} parent=11 // pred_fallthru
          _
        // Predicated region
        $region17: #{tpu_custom_call.1} parent=11 // pred_check
          %p227 = pneg %p107
        $region18: #{tpu_custom_call.1} parent=11 // pred_check_branch
          %229 = sbr.rel (%p227) target = $region20
        $region19: #{tpu_custom_call.1} parent=11 // pred_region
          _
        $region20: #{tpu_custom_call.1} parent=11 // pred_fallthru
          _
        // Predicated region
        $region21: #{tpu_custom_call.1} parent=11 // pred_check
          %p230 = pneg %p128
        $region22: #{tpu_custom_call.1} parent=11 // pred_check_branch
          %232 = sbr.rel (%p230) target = $region24
        $region23: #{tpu_custom_call.1} parent=11 // pred_region
          %s234 = ssub.s32 2048, 2048
          %235 = vsyncadd [#allocation7], %s234
          %s236 = sshll.u32 [#allocation8], 4
          %s237 = int_to_ptr.vmem [resolvable:$true] %s236
          %242 = dma.hbm_to_vmem [thread:$0]  %s3, 2048, %s237, [#allocation7], 128, 128, 8
        $region24: #{tpu_custom_call.1} parent=11 // pred_fallthru
          _
        // Predicated region
        $region25: #{tpu_custom_call.1} parent=11 // pred_check
          %p243 = pneg %p149
        $region26: #{tpu_custom_call.1} parent=11 // pred_check_branch
          %245 = sbr.rel (%p243) target = $region28
        $region27: #{tpu_custom_call.1} parent=11 // pred_region
          %s247 = ssub.s32 2048, 2048
          %248 = vsyncadd [#allocation10], %s247
          %s249 = sshll.u32 [#allocation9], 4
          %s250 = int_to_ptr.vmem [resolvable:$true] %s249
          %255 = dma.hbm_to_vmem [thread:$0]  %s4, 2048, %s250, [#allocation10], 128, 128, 8
        $region28: #{tpu_custom_call.1} parent=11 // pred_fallthru
          _
        // Predicated region
        $region29: #{tpu_custom_call.1} parent=11 // pred_check
          %p256 = pneg %p170
        $region30: #{tpu_custom_call.1} parent=11 // pred_check_branch
          %258 = sbr.rel (%p256) target = $region32
        $region31: #{tpu_custom_call.1} parent=11 // pred_region
          %s260 = ssub.s32 2048, 2048
          %261 = vsyncadd [#allocation10], %s260
          %s262 = sshll.u32 [#allocation11], 4
          %s263 = int_to_ptr.vmem [resolvable:$true] %s262
          %268 = dma.hbm_to_vmem [thread:$0]  %s5, 2048, %s263, [#allocation10], 128, 128, 8
        $region32: #{tpu_custom_call.1} parent=11 // pred_fallthru
          _
      $region12: #{tpu_custom_call.1} parent=5 // pred_fallthru
        _
      %p269 = scmp.lt.s32.totalorder %s20, 2
      // Predicated region
      $region33: #{tpu_custom_call.1} parent=5 // pred_check
        %p270 = pneg %p269
      $region34: #{tpu_custom_call.1} parent=5 // pred_check_branch
        %272 = sbr.rel (%p270) target = $region36
      $region35: #{tpu_custom_call.1} parent=5 // pred_region
        // Predicated region
        $region37: #{tpu_custom_call.1} parent=35 // pred_check
          %p273 = pneg %p54
        $region38: #{tpu_custom_call.1} parent=35 // pred_check_branch
          %275 = sbr.rel (%p273) target = $region40
        $region39: #{tpu_custom_call.1} parent=35 // pred_region
          %s276 = sand.u32 %s44, 1
          %s277 = scalar_lea.sflag [#allocation4], %s276
          %s278 = sand.u32 %s44, 1
          %s279 = smul.addr %s278, 8
          %s280 = scalar_lea.vmem [#allocation3], %s279
          %s282 = ssub.s32 128, 128
          %283 = vsyncadd %s277, %s282
          %s284 = sadd.s32 %s28, %s27
          %s285 = smul.addr %s284, 128
          %s286 = scalar_lea.hbm %s0, %s285
          %s288 = sshll.u32 %s280, 4
          %s289 = int_to_ptr.vmem [resolvable:$true] %s288
          %291 = dma.hbm_to_vmem [thread:$0]  %s286, 128, %s289, %s277
        $region40: #{tpu_custom_call.1} parent=35 // pred_fallthru
          _
      $region36: #{tpu_custom_call.1} parent=5 // pred_fallthru
        _
      %p292 = scmp.le.s32.totalorder 1, %s20
      %p293 = scmp.lt.s32.totalorder %s20, 3
      %p294 = pnand %p292, %p293
      %p295 = pneg %p294
      // Predicated region
      $region41: #{tpu_custom_call.1} parent=5 // pred_check
        _
      $region42: #{tpu_custom_call.1} parent=5 // pred_check_branch
        %297 = sbr.rel (%p294) target = $region44
      $region43: #{tpu_custom_call.1} parent=5 // pred_region
        %s298 = ssub.s32 %s20, 1
        %s299 = sand.u32 %s47, 1
        %s300 = scalar_lea.sflag [#allocation4], %s299
        %s301 = sand.u32 %s47, 1
        %s302 = smul.addr %s301, 8
        %s303 = scalar_lea.vmem [#allocation3], %s302
        // Predicated region
        $region45: #{tpu_custom_call.1} parent=43 // pred_check
          %p304 = pneg %p60
        $region46: #{tpu_custom_call.1} parent=43 // pred_check_branch
          %306 = sbr.rel (%p304) target = $region48
        $region47: #{tpu_custom_call.1} parent=43 // pred_region
          %307 = dma.done %s300, 128
        $region48: #{tpu_custom_call.1} parent=43 // pred_fallthru
          _
        // Predicated region
        $region49: #{tpu_custom_call.1} parent=43 // pred_check
          %p308 = pneg %p86
        $region50: #{tpu_custom_call.1} parent=43 // pred_check_branch
          %310 = sbr.rel (%p308) target = $region52
        $region51: #{tpu_custom_call.1} parent=43 // pred_region
          %311 = dma.done [#allocation7], 1024
        $region52: #{tpu_custom_call.1} parent=43 // pred_fallthru
          _
        // Predicated region
        $region53: #{tpu_custom_call.1} parent=43 // pred_check
          %p312 = pneg %p128
        $region54: #{tpu_custom_call.1} parent=43 // pred_check_branch
          %314 = sbr.rel (%p312) target = $region56
        $region55: #{tpu_custom_call.1} parent=43 // pred_region
          %315 = dma.done [#allocation7], 2048
        $region56: #{tpu_custom_call.1} parent=43 // pred_fallthru
          _
        // Predicated region
        $region57: #{tpu_custom_call.1} parent=43 // pred_check
          %p316 = pneg %p149
        $region58: #{tpu_custom_call.1} parent=43 // pred_check_branch
          %318 = sbr.rel (%p316) target = $region60
        $region59: #{tpu_custom_call.1} parent=43 // pred_region
          %319 = dma.done [#allocation10], 2048
        $region60: #{tpu_custom_call.1} parent=43 // pred_fallthru
          _
        // Predicated region
        $region61: #{tpu_custom_call.1} parent=43 // pred_check
          %p320 = pneg %p170
        $region62: #{tpu_custom_call.1} parent=43 // pred_check_branch
          %322 = sbr.rel (%p320) target = $region64
        $region63: #{tpu_custom_call.1} parent=43 // pred_region
          %323 = dma.done [#allocation10], 2048
        $region64: #{tpu_custom_call.1} parent=43 // pred_fallthru
          _
        %s324 = sand.u32 %s47, 1
        %s325 = scalar_lea.sflag [#allocation4], %s324
        %s326 = sand.u32 %s47, 1
        %s327 = smul.addr %s326, 8
        %s328 = scalar_lea.vmem [#allocation3], %s327
        %p329 = pneg %p60
        %p330 = pneg %p57
        %p331 = pneg %p86
        %p332 = pneg %p83
        %p333 = pneg %p107
        %p334 = pneg %p104
        %p335 = pneg %p128
        %p336 = pneg %p125
        %p337 = pneg %p149
        %p338 = pneg %p146
        %p339 = pneg %p170
        %p340 = pneg %p167
        %p341 = pneg %p196
        %p342 = pneg %p193
        %s343 = sand.u32 %s183, 1
        %s344 = scalar_lea.sflag [#allocation5], %s343
        %s345 = sand.u32 %s183, 1
        %s346 = smul.addr %s345, 8
        %s347 = scalar_lea.vmem [#allocation12], %s346
        %s348 = smul.u32 8, %s30
        %p349 = scmp.eq.s32.totalorder %s30, 0
        // Predicated region
        $region65: #{tpu_custom_call.1} parent=43 // pred_check
          %p350 = pneg %p349
        $region66: #{tpu_custom_call.1} parent=43 // pred_check_branch
          %352 = sbr.rel (%p350) target = $region68
        $region67: #{tpu_custom_call.1} parent=43 // pred_region
          %353 = vst [vmem:[#allocation2] sm:$0xff] 0.0
        $region68: #{tpu_custom_call.1} parent=43 // pred_fallthru
          _
        %v354 = vld [vmem:[%s303] sm:$0xff]
        %v355 = vld [vmem:[#allocation6] sm:$0xff]
        %v356 = vld [vmem:[#allocation6 + $0x8] sm:$0xff]
        %v357 = vld [vmem:[#allocation6 + $0x10] sm:$0xff]
        %v358 = vld [vmem:[#allocation6 + $0x18] sm:$0xff]
        %v359 = vld [vmem:[#allocation6 + $0x20] sm:$0xff]
        %v360 = vld [vmem:[#allocation6 + $0x28] sm:$0xff]
        %v361 = vld [vmem:[#allocation6 + $0x30] sm:$0xff]
        %v362 = vld [vmem:[#allocation6 + $0x38] sm:$0xff]
        %v363 = vld [vmem:[#allocation2] sm:$0xff]
        %vm364 = vcmask 523264
        %v366 = vsel %vm364, %v354, 0
        %368 = vmatprep.subr.mxu0 0.0
        %369 = vmatpush1.msra.mxu0 %v355
        %370 = vmatprep.subr.mxu0 0.0
        %371 = vmatpush1.msra.mxu0 %v356
        %372 = vmatprep.subr.mxu0 0.0
        %373 = vmatpush1.msra.mxu0 %v357
        %374 = vmatprep.subr.mxu0 0.0
        %375 = vmatpush1.msra.mxu0 %v358
        %376 = vmatprep.subr.mxu0 0.0
        %377 = vmatpush1.msra.mxu0 %v359
        %378 = vmatprep.subr.mxu0 0.0
        %379 = vmatpush1.msra.mxu0 %v360
        %380 = vmatprep.subr.mxu0 0.0
        %381 = vmatpush1.msra.mxu0 %v361
        %382 = vmatprep.subr.mxu0 0.0
        %383 = vmatpush1.msra.mxu0 %v362
        %384 = vmatprep.subr.mxu0 0.0
        %385 = vmatpush1.msra.mxu0 0.0
        %386 = vmatprep.subr.mxu0 0.0
        %387 = vmatpush1.msra.mxu0 0.0
        %388 = vmatprep.subr.mxu0 0.0
        %389 = vmatpush1.msra.mxu0 0.0
        %390 = vmatprep.subr.mxu0 0.0
        %391 = vmatpush1.msra.mxu0 0.0
        %392 = vmatprep.subr.mxu0 0.0
        %393 = vmatpush1.msra.mxu0 0.0
        %394 = vmatprep.subr.mxu0 0.0
        %395 = vmatpush1.msra.mxu0 0.0
        %396 = vmatprep.subr.mxu0 0.0
        %397 = vmatpush1.msra.mxu0 0.0
        %398 = vmatprep.subr.mxu0 0.0
        %399 = vmatpush1.msra.mxu0 0.0
        %400 = vmatprep.subr.mxu0 0.0
        %401 = vmatpush1.msra.mxu0 0.0
        %402 = vmatprep.subr.mxu0 0.0
        %403 = vmatpush1.msra.mxu0 0.0
        %404 = vmatprep.subr.mxu0 0.0
        %405 = vmatpush1.msra.mxu0 0.0
        %406 = vmatprep.subr.mxu0 0.0
        %407 = vmatpush1.msra.mxu0 0.0
        %408 = vmatprep.subr.mxu0 0.0
        %409 = vmatpush1.msra.mxu0 0.0
        %410 = vmatprep.subr.mxu0 0.0
        %411 = vmatpush1.msra.mxu0 0.0
        %412 = vmatprep.subr.mxu0 0.0
        %413 = vmatpush1.msra.mxu0 0.0
        %414 = vmatprep.subr.mxu0 0.0
        %415 = vmatpush1.msra.mxu0 0.0
        %416 = vmatprep.subr.mxu0 0.0
        %417 = vmatpush1.msra.mxu0 0.0
        %418 = vmatprep.subr.mxu0 0.0
        %419 = vmatpush1.msra.mxu0 0.0
        %420 = vmatprep.subr.mxu0 0.0
        %421 = vmatpush1.msra.mxu0 0.0
        %422 = vmatprep.subr.mxu0 0.0
        %423 = vmatpush1.msra.mxu0 0.0
        %424 = vmatprep.subr.mxu0 0.0
        %425 = vmatpush1.msra.mxu0 0.0
        %426 = vmatprep.subr.mxu0 0.0
        %427 = vmatpush1.msra.mxu0 0.0
        %428 = vmatprep.subr.mxu0 0.0
        %429 = vmatpush1.msra.mxu0 0.0
        %430 = vmatprep.subr.mxu0 0.0
        %431 = vmatpush1.msra.mxu0 0.0
        %432 = vmatprep.mubr.f32.mxu0 0.0
        %433 = vmatmul.mubr.f32.gmra.mrb[0].mxu0 %v366
        %v434 = vpop.f32.mrb[0].mxu0
        %v435 = vadd.f32 0.0, %v434
        %v436 = vpop.f32.mrb[0].mxu0
        %437 = vdwg.mxu0
        %v438 = vadd.f32 %v363, %v435
        %439 = vst [vmem:[#allocation2] sm:$0xff] %v438
        // Predicated region
        $region69: #{tpu_custom_call.1} parent=43 // pred_check
          %p440 = pneg %p349
        $region70: #{tpu_custom_call.1} parent=43 // pred_check_branch
          %442 = sbr.rel (%p440) target = $region72
        $region71: #{tpu_custom_call.1} parent=43 // pred_region
          %v443 = vld [vmem:[#allocation2] sm:$0xff]
          %v444 = vld [vmem:[%s2] sm:$0x1]
          %v445 = vlaneseq
          %v446 = vshrl.u32 %v445, 7
          %v447 = vsub.s32 0, %v446
          %v448 = vrot.slane %v444, %v447
          %v449 = vadd.f32 %v443, %v448
          %v450 = vmax.f32 %v449, 0.0
          %v451 = vld [vmem:[#allocation8] sm:$0xff]
          %v452 = vld [vmem:[#allocation8 + $0x8] sm:$0xff]
          %v453 = vld [vmem:[#allocation8 + $0x10] sm:$0xff]
          %v454 = vld [vmem:[#allocation8 + $0x18] sm:$0xff]
          %v455 = vld [vmem:[#allocation8 + $0x20] sm:$0xff]
          %v456 = vld [vmem:[#allocation8 + $0x28] sm:$0xff]
          %v457 = vld [vmem:[#allocation8 + $0x30] sm:$0xff]
          %v458 = vld [vmem:[#allocation8 + $0x38] sm:$0xff]
          %v459 = vld [vmem:[#allocation8 + $0x40] sm:$0xff]
          %v460 = vld [vmem:[#allocation8 + $0x48] sm:$0xff]
          %v461 = vld [vmem:[#allocation8 + $0x50] sm:$0xff]
          %v462 = vld [vmem:[#allocation8 + $0x58] sm:$0xff]
          %v463 = vld [vmem:[#allocation8 + $0x60] sm:$0xff]
          %v464 = vld [vmem:[#allocation8 + $0x68] sm:$0xff]
          %v465 = vld [vmem:[#allocation8 + $0x70] sm:$0xff]
          %v466 = vld [vmem:[#allocation8 + $0x78] sm:$0xff]
          %v467 = vld [vmem:[%s2 + $0x1] sm:$0x1]
          %v468 = vlaneseq
          %v469 = vshrl.u32 %v468, 7
          %v470 = vsub.s32 0, %v469
          %v471 = vrot.slane %v467, %v470
          %472 = vmatprep.subr.mxu0 0.0
          %473 = vmatpush1.msra.mxu0 %v451
          %474 = vmatprep.subr.mxu0 0.0
          %475 = vmatpush1.msra.mxu0 %v452
          %476 = vmatprep.subr.mxu0 0.0
          %477 = vmatpush1.msra.mxu0 %v453
          %478 = vmatprep.subr.mxu0 0.0
          %479 = vmatpush1.msra.mxu0 %v454
          %480 = vmatprep.subr.mxu0 0.0
          %481 = vmatpush1.msra.mxu0 %v455
          %482 = vmatprep.subr.mxu0 0.0
          %483 = vmatpush1.msra.mxu0 %v456
          %484 = vmatprep.subr.mxu0 0.0
          %485 = vmatpush1.msra.mxu0 %v457
          %486 = vmatprep.subr.mxu0 0.0
          %487 = vmatpush1.msra.mxu0 %v458
          %488 = vmatprep.subr.mxu0 0.0
          %489 = vmatpush1.msra.mxu0 %v459
          %490 = vmatprep.subr.mxu0 0.0
          %491 = vmatpush1.msra.mxu0 %v460
          %492 = vmatprep.subr.mxu0 0.0
          %493 = vmatpush1.msra.mxu0 %v461
          %494 = vmatprep.subr.mxu0 0.0
          %495 = vmatpush1.msra.mxu0 %v462
          %496 = vmatprep.subr.mxu0 0.0
          %497 = vmatpush1.msra.mxu0 %v463
          %498 = vmatprep.subr.mxu0 0.0
          %499 = vmatpush1.msra.mxu0 %v464
          %500 = vmatprep.subr.mxu0 0.0
          %501 = vmatpush1.msra.mxu0 %v465
          %502 = vmatprep.subr.mxu0 0.0
          %503 = vmatpush1.msra.mxu0 %v466
          %504 = vmatprep.subr.mxu0 0.0
          %505 = vmatpush1.msra.mxu0 0.0
          %506 = vmatprep.subr.mxu0 0.0
          %507 = vmatpush1.msra.mxu0 0.0
          %508 = vmatprep.subr.mxu0 0.0
          %509 = vmatpush1.msra.mxu0 0.0
          %510 = vmatprep.subr.mxu0 0.0
          %511 = vmatpush1.msra.mxu0 0.0
          %512 = vmatprep.subr.mxu0 0.0
          %513 = vmatpush1.msra.mxu0 0.0
          %514 = vmatprep.subr.mxu0 0.0
          %515 = vmatpush1.msra.mxu0 0.0
          %516 = vmatprep.subr.mxu0 0.0
          %517 = vmatpush1.msra.mxu0 0.0
          %518 = vmatprep.subr.mxu0 0.0
          %519 = vmatpush1.msra.mxu0 0.0
          %520 = vmatprep.subr.mxu0 0.0
          %521 = vmatpush1.msra.mxu0 0.0
          %522 = vmatprep.subr.mxu0 0.0
          %523 = vmatpush1.msra.mxu0 0.0
          %524 = vmatprep.subr.mxu0 0.0
          %525 = vmatpush1.msra.mxu0 0.0
          %526 = vmatprep.subr.mxu0 0.0
          %527 = vmatpush1.msra.mxu0 0.0
          %528 = vmatprep.subr.mxu0 0.0
          %529 = vmatpush1.msra.mxu0 0.0
          %530 = vmatprep.subr.mxu0 0.0
          %531 = vmatpush1.msra.mxu0 0.0
          %532 = vmatprep.subr.mxu0 0.0
          %533 = vmatpush1.msra.mxu0 0.0
          %534 = vmatprep.subr.mxu0 0.0
          %535 = vmatpush1.msra.mxu0 0.0
          %536 = vmatprep.mubr.f32.mxu0 0.0
          %537 = vmatmul.mubr.f32.gmra.mrb[0].mxu0 %v450
          %v538 = vpop.f32.mrb[0].mxu0
          %v539 = vadd.f32 %v471, %v538
          %v540 = vpop.f32.mrb[0].mxu0
          %541 = vdwg.mxu0
          %v542 = vmax.f32 %v539, 0.0
          %v543 = vld [vmem:[#allocation9] sm:$0xff]
          %v544 = vld [vmem:[#allocation9 + $0x8] sm:$0xff]
          %v545 = vld [vmem:[#allocation9 + $0x10] sm:$0xff]
          %v546 = vld [vmem:[#allocation9 + $0x18] sm:$0xff]
          %v547 = vld [vmem:[#allocation9 + $0x20] sm:$0xff]
          %v548 = vld [vmem:[#allocation9 + $0x28] sm:$0xff]
          %v549 = vld [vmem:[#allocation9 + $0x30] sm:$0xff]
          %v550 = vld [vmem:[#allocation9 + $0x38] sm:$0xff]
          %v551 = vld [vmem:[#allocation9 + $0x40] sm:$0xff]
          %v552 = vld [vmem:[#allocation9 + $0x48] sm:$0xff]
          %v553 = vld [vmem:[#allocation9 + $0x50] sm:$0xff]
          %v554 = vld [vmem:[#allocation9 + $0x58] sm:$0xff]
          %v555 = vld [vmem:[#allocation9 + $0x60] sm:$0xff]
          %v556 = vld [vmem:[#allocation9 + $0x68] sm:$0xff]
          %v557 = vld [vmem:[#allocation9 + $0x70] sm:$0xff]
          %v558 = vld [vmem:[#allocation9 + $0x78] sm:$0xff]
          %v559 = vld [vmem:[%s2 + $0x2] sm:$0x1]
          %v560 = vlaneseq
          %v561 = vshrl.u32 %v560, 7
          %v562 = vsub.s32 0, %v561
          %v563 = vrot.slane %v559, %v562
          %564 = vmatprep.subr.mxu0 0.0
          %565 = vmatpush1.msra.mxu0 %v543
          %566 = vmatprep.subr.mxu0 0.0
          %567 = vmatpush1.msra.mxu0 %v544
          %568 = vmatprep.subr.mxu0 0.0
          %569 = vmatpush1.msra.mxu0 %v545
          %570 = vmatprep.subr.mxu0 0.0
          %571 = vmatpush1.msra.mxu0 %v546
          %572 = vmatprep.subr.mxu0 0.0
          %573 = vmatpush1.msra.mxu0 %v547
          %574 = vmatprep.subr.mxu0 0.0
          %575 = vmatpush1.msra.mxu0 %v548
          %576 = vmatprep.subr.mxu0 0.0
          %577 = vmatpush1.msra.mxu0 %v549
          %578 = vmatprep.subr.mxu0 0.0
          %579 = vmatpush1.msra.mxu0 %v550
          %580 = vmatprep.subr.mxu0 0.0
          %581 = vmatpush1.msra.mxu0 %v551
          %582 = vmatprep.subr.mxu0 0.0
          %583 = vmatpush1.msra.mxu0 %v552
          %584 = vmatprep.subr.mxu0 0.0
          %585 = vmatpush1.msra.mxu0 %v553
          %586 = vmatprep.subr.mxu0 0.0
          %587 = vmatpush1.msra.mxu0 %v554
          %588 = vmatprep.subr.mxu0 0.0
          %589 = vmatpush1.msra.mxu0 %v555
          %590 = vmatprep.subr.mxu0 0.0
          %591 = vmatpush1.msra.mxu0 %v556
          %592 = vmatprep.subr.mxu0 0.0
          %593 = vmatpush1.msra.mxu0 %v557
          %594 = vmatprep.subr.mxu0 0.0
          %595 = vmatpush1.msra.mxu0 %v558
          %596 = vmatprep.subr.mxu0 0.0
          %597 = vmatpush1.msra.mxu0 0.0
          %598 = vmatprep.subr.mxu0 0.0
          %599 = vmatpush1.msra.mxu0 0.0
          %600 = vmatprep.subr.mxu0 0.0
          %601 = vmatpush1.msra.mxu0 0.0
          %602 = vmatprep.subr.mxu0 0.0
          %603 = vmatpush1.msra.mxu0 0.0
          %604 = vmatprep.subr.mxu0 0.0
          %605 = vmatpush1.msra.mxu0 0.0
          %606 = vmatprep.subr.mxu0 0.0
          %607 = vmatpush1.msra.mxu0 0.0
          %608 = vmatprep.subr.mxu0 0.0
          %609 = vmatpush1.msra.mxu0 0.0
          %610 = vmatprep.subr.mxu0 0.0
          %611 = vmatpush1.msra.mxu0 0.0
          %612 = vmatprep.subr.mxu0 0.0
          %613 = vmatpush1.msra.mxu0 0.0
          %614 = vmatprep.subr.mxu0 0.0
          %615 = vmatpush1.msra.mxu0 0.0
          %616 = vmatprep.subr.mxu0 0.0
          %617 = vmatpush1.msra.mxu0 0.0
          %618 = vmatprep.subr.mxu0 0.0
          %619 = vmatpush1.msra.mxu0 0.0
          %620 = vmatprep.subr.mxu0 0.0
          %621 = vmatpush1.msra.mxu0 0.0
          %622 = vmatprep.subr.mxu0 0.0
          %623 = vmatpush1.msra.mxu0 0.0
          %624 = vmatprep.subr.mxu0 0.0
          %625 = vmatpush1.msra.mxu0 0.0
          %626 = vmatprep.subr.mxu0 0.0
          %627 = vmatpush1.msra.mxu0 0.0
          %628 = vmatprep.mubr.f32.mxu0 0.0
          %629 = vmatmul.mubr.f32.gmra.mrb[0].mxu0 %v542
          %v630 = vpop.f32.mrb[0].mxu0
          %v631 = vadd.f32 %v563, %v630
          %v632 = vpop.f32.mrb[0].mxu0
          %633 = vdwg.mxu0
          %v634 = vmax.f32 %v631, 0.0
          %v635 = vld [vmem:[#allocation11] sm:$0xff]
          %v636 = vld [vmem:[#allocation11 + $0x8] sm:$0xff]
          %v637 = vld [vmem:[#allocation11 + $0x10] sm:$0xff]
          %v638 = vld [vmem:[#allocation11 + $0x18] sm:$0xff]
          %v639 = vld [vmem:[#allocation11 + $0x20] sm:$0xff]
          %v640 = vld [vmem:[#allocation11 + $0x28] sm:$0xff]
          %v641 = vld [vmem:[#allocation11 + $0x30] sm:$0xff]
          %v642 = vld [vmem:[#allocation11 + $0x38] sm:$0xff]
          %v643 = vld [vmem:[#allocation11 + $0x40] sm:$0xff]
          %v644 = vld [vmem:[#allocation11 + $0x48] sm:$0xff]
          %v645 = vld [vmem:[#allocation11 + $0x50] sm:$0xff]
          %v646 = vld [vmem:[#allocation11 + $0x58] sm:$0xff]
          %v647 = vld [vmem:[#allocation11 + $0x60] sm:$0xff]
          %v648 = vld [vmem:[#allocation11 + $0x68] sm:$0xff]
          %v649 = vld [vmem:[#allocation11 + $0x70] sm:$0xff]
          %v650 = vld [vmem:[#allocation11 + $0x78] sm:$0xff]
          %v651 = vld [vmem:[%s2 + $0x3] sm:$0x1]
          %v652 = vlaneseq
          %v653 = vshrl.u32 %v652, 7
          %v654 = vsub.s32 0, %v653
          %v655 = vrot.slane %v651, %v654
          %656 = vmatprep.subr.mxu0 0.0
          %657 = vmatpush1.msra.mxu0 %v635
          %658 = vmatprep.subr.mxu0 0.0
          %659 = vmatpush1.msra.mxu0 %v636
          %660 = vmatprep.subr.mxu0 0.0
          %661 = vmatpush1.msra.mxu0 %v637
          %662 = vmatprep.subr.mxu0 0.0
          %663 = vmatpush1.msra.mxu0 %v638
          %664 = vmatprep.subr.mxu0 0.0
          %665 = vmatpush1.msra.mxu0 %v639
          %666 = vmatprep.subr.mxu0 0.0
          %667 = vmatpush1.msra.mxu0 %v640
          %668 = vmatprep.subr.mxu0 0.0
          %669 = vmatpush1.msra.mxu0 %v641
          %670 = vmatprep.subr.mxu0 0.0
          %671 = vmatpush1.msra.mxu0 %v642
          %672 = vmatprep.subr.mxu0 0.0
          %673 = vmatpush1.msra.mxu0 %v643
          %674 = vmatprep.subr.mxu0 0.0
          %675 = vmatpush1.msra.mxu0 %v644
          %676 = vmatprep.subr.mxu0 0.0
          %677 = vmatpush1.msra.mxu0 %v645
          %678 = vmatprep.subr.mxu0 0.0
          %679 = vmatpush1.msra.mxu0 %v646
          %680 = vmatprep.subr.mxu0 0.0
          %681 = vmatpush1.msra.mxu0 %v647
          %682 = vmatprep.subr.mxu0 0.0
          %683 = vmatpush1.msra.mxu0 %v648
          %684 = vmatprep.subr.mxu0 0.0
          %685 = vmatpush1.msra.mxu0 %v649
          %686 = vmatprep.subr.mxu0 0.0
          %687 = vmatpush1.msra.mxu0 %v650
          %688 = vmatprep.subr.mxu0 0.0
          %689 = vmatpush1.msra.mxu0 0.0
          %690 = vmatprep.subr.mxu0 0.0
          %691 = vmatpush1.msra.mxu0 0.0
          %692 = vmatprep.subr.mxu0 0.0
          %693 = vmatpush1.msra.mxu0 0.0
          %694 = vmatprep.subr.mxu0 0.0
          %695 = vmatpush1.msra.mxu0 0.0
          %696 = vmatprep.subr.mxu0 0.0
          %697 = vmatpush1.msra.mxu0 0.0
          %698 = vmatprep.subr.mxu0 0.0
          %699 = vmatpush1.msra.mxu0 0.0
          %700 = vmatprep.subr.mxu0 0.0
          %701 = vmatpush1.msra.mxu0 0.0
          %702 = vmatprep.subr.mxu0 0.0
          %703 = vmatpush1.msra.mxu0 0.0
          %704 = vmatprep.subr.mxu0 0.0
          %705 = vmatpush1.msra.mxu0 0.0
          %706 = vmatprep.subr.mxu0 0.0
          %707 = vmatpush1.msra.mxu0 0.0
          %708 = vmatprep.subr.mxu0 0.0
          %709 = vmatpush1.msra.mxu0 0.0
          %710 = vmatprep.subr.mxu0 0.0
          %711 = vmatpush1.msra.mxu0 0.0
          %712 = vmatprep.subr.mxu0 0.0
          %713 = vmatpush1.msra.mxu0 0.0
          %714 = vmatprep.subr.mxu0 0.0
          %715 = vmatpush1.msra.mxu0 0.0
          %716 = vmatprep.subr.mxu0 0.0
          %717 = vmatpush1.msra.mxu0 0.0
          %718 = vmatprep.subr.mxu0 0.0
          %719 = vmatpush1.msra.mxu0 0.0
          %720 = vmatprep.mubr.f32.mxu0 0.0
          %721 = vmatmul.mubr.f32.gmra.mrb[0].mxu0 %v634
          %v722 = vpop.f32.mrb[0].mxu0
          %v723 = vadd.f32 %v655, %v722
          %v724 = vpop.f32.mrb[0].mxu0
          %725 = vdwg.mxu0
          %726 = vst [vmem:[%s347] sm:$0xff] %v723
        $region72: #{tpu_custom_call.1} parent=43 // pred_fallthru
          _
        %s727 = sand.u32 %s183, 1
        %s728 = scalar_lea.sflag [#allocation5], %s727
        %s729 = sand.u32 %s183, 1
        %s730 = smul.addr %s729, 8
        %s731 = scalar_lea.vmem [#allocation12], %s730
        // Predicated region
        $region73: #{tpu_custom_call.1} parent=43 // pred_check
          %p732 = pneg %p193
        $region74: #{tpu_custom_call.1} parent=43 // pred_check_branch
          %734 = sbr.rel (%p732) target = $region76
        $region75: #{tpu_custom_call.1} parent=43 // pred_region
          %s736 = ssub.s32 128, 128
          %737 = vsyncadd %s728, %s736
          %s738 = smul.addr %s29, 128
          %s739 = scalar_lea.hbm %s6, %s738
          %s741 = sshll.u32 %s731, 4
          %s742 = int_to_ptr.vmem [resolvable:$true] %s741
          %744 = dma.vmem_to_hbm [thread:$0]  %s742, 128, %s739, %s728
        $region76: #{tpu_custom_call.1} parent=43 // pred_fallthru
          _
      $region44: #{tpu_custom_call.1} parent=5 // pred_fallthru
        _
      %p745 = scmp.le.s32.totalorder 2, %s20
      // Predicated region
      $region77: #{tpu_custom_call.1} parent=5 // pred_check
        %p746 = pneg %p745
      $region78: #{tpu_custom_call.1} parent=5 // pred_check_branch
        %748 = sbr.rel (%p746) target = $region80
      $region79: #{tpu_custom_call.1} parent=5 // pred_region
        %s749 = ssub.s32 %s20, 2
        // Predicated region
        $region81: #{tpu_custom_call.1} parent=79 // pred_check
          %p750 = pneg %p199
        $region82: #{tpu_custom_call.1} parent=79 // pred_check_branch
          %752 = sbr.rel (%p750) target = $region84
        $region83: #{tpu_custom_call.1} parent=79 // pred_region
          %s753 = sand.u32 %s184, 1
          %s754 = scalar_lea.sflag [#allocation5], %s753
          %s755 = sand.u32 %s184, 1
          %s756 = smul.addr %s755, 8
          %s757 = scalar_lea.vmem [#allocation12], %s756
          %758 = dma.done %s754, 128
        $region84: #{tpu_custom_call.1} parent=79 // pred_fallthru
          _
      $region80: #{tpu_custom_call.1} parent=5 // pred_fallthru
        _
    $region6: #{tpu_custom_call.1} parent=1 // loop_footer
      %s24 = sadd.s32 1, %s20
    $region7: #{tpu_custom_call.1} parent=1 // loop_footer_branch
      %19 = sbr.rel target = $region3
    $region8: #{tpu_custom_call.1} parent=1 // loop_exit
      _
    %759 = vsyncpa [#allocation4], 1
    %s760 = scalar_lea.sflag [#allocation4], 1
    %761 = vsyncpa %s760, 1
    %762 = vsyncpa [#allocation7], 1
    %763 = vsyncpa [#allocation10], 1
    %764 = vsyncpa [#allocation5], 1
    %s765 = scalar_lea.sflag [#allocation5], 1
    %766 = vsyncpa %s765, 1

</llo_original>
